<compile_context>
chip_gen: v6e
topology: v6e:2x2x1
jax: 0.10.0
libtpu: 0.0.40
codegen_flags: <defaults>
</compile_context>

<pallas_src>
import jax
import jax.numpy as jnp
import numpy as np
from jax.experimental import pallas as pl
from jax.experimental.pallas import tpu as pltpu


_LANE = 128
_SMALL_BYTES = 1 << 20            # <= 1 MiB: single full-array block, no grid.
_TARGET_BLOCK_BYTES = 4 << 20     # ~4 MiB streaming blocks for big arrays.


def _identity_kernel(x_ref, o_ref):
    # Pure pass-through copy of the current tile.
    o_ref[...] = x_ref[...]


def _pick_lane_dense_shape(total):
    """Return (rows, cols) with cols a large multiple of 128 dividing total,
    or None if no such factorization exists."""
    for cols in (2048, 1024, 512, 256, _LANE):
        if total % cols == 0:
            return total // cols, cols
    return None


def _identity_copy_2d(x2d: jax.Array) -> jax.Array:
    """Identity copy of a 2D array, aliasing the input buffer to the output."""
    rows, cols = x2d.shape
    itemsize = jnp.dtype(x2d.dtype).itemsize
    nbytes = rows * cols * itemsize

    if nbytes <= _SMALL_BYTES or rows <= 8:
        # Single full-array block: no grid, no pipeline prologue overhead.
        return pl.pallas_call(
            _identity_kernel,
            out_shape=jax.ShapeDtypeStruct((rows, cols), x2d.dtype),
            input_output_aliases={0: 0},
        )(x2d)

    # Streaming path: multi-MiB, sublane-aligned row tiles over a lane-dense
    # last dim (cols equals the full array extent, so the (8,128) rule holds).
    tile_rows = max(8, _TARGET_BLOCK_BYTES // (cols * itemsize))
    tile_rows = min(tile_rows, rows)
    tile_rows = max(8, (tile_rows // 8) * 8)  # multiple of 8 sublanes
    grid = (pl.cdiv(rows, tile_rows),)

    return pl.pallas_call(
        _identity_kernel,
        out_shape=jax.ShapeDtypeStruct((rows, cols), x2d.dtype),
        grid=grid,
        in_specs=[pl.BlockSpec((tile_rows, cols), lambda i: (i, 0))],
        out_specs=pl.BlockSpec((tile_rows, cols), lambda i: (i, 0)),
        input_output_aliases={0: 0},
        compiler_params=pltpu.CompilerParams(
            dimension_semantics=("parallel",),
            # 2 in + 2 out double-buffered ~4 MiB tiles fit comfortably on
            # v5e (16 MiB scoped default would not), v6e, and v7x (64 MiB).
            vmem_limit_bytes=32 * 1024 * 1024,
        ),
    )(x2d)


def pallas_identity(*args):
    """Mirror of Identity.forward(*args): returns args unchanged."""
    outs = []
    for a in args:
        a = jnp.asarray(a)
        if a.ndim == 0 or a.size == 0:
            # Scalars / empties: nothing to tile; pass through as-is.
            outs.append(a)
            continue
        orig_shape = a.shape
        total = a.size
        lane_dense = _pick_lane_dense_shape(total)
        if lane_dense is not None:
            rows, cols = lane_dense
        else:
            # Fallback: natural (leading, last-dim) flattening.
            cols = orig_shape[-1]
            rows = total // cols
        y2d = _identity_copy_2d(a.reshape(rows, cols))
        outs.append(y2d.reshape(orig_shape))
    return tuple(outs)


if __name__ == "__main__":
    key = jax.random.PRNGKey(0)
    k1, k2 = jax.random.split(key)
    # Small shapes consistent with typical NCHW conv inputs / sequence tensors.
    x = jax.random.normal(k1, (2, 4, 16, 16), dtype=jnp.float32)  # NCHW
    y = jax.random.normal(k2, (2, 8, 32), dtype=jnp.float32)      # (B, seq, hidden)

    # Capture host references before the call (outputs may alias input buffers).
    x_ref = jax.device_get(x)
    y_ref = jax.device_get(y)

    out = pallas_identity(x, y)
    out = jax.block_until_ready(out)

    assert isinstance(out, tuple) and len(out) == 2
    assert out[0].shape == x_ref.shape and out[0].dtype == x_ref.dtype
    assert out[1].shape == y_ref.shape and out[1].dtype == y_ref.dtype
    assert np.array_equal(jax.device_get(out[0]), x_ref)
    assert np.array_equal(jax.device_get(out[1]), y_ref)
    print("KERNEL_OK")
</pallas_src>

<mosaic_0001>
module attributes {stable_mosaic.version = 11 : i64} {
  func.func @_identity_kernel(%arg0: memref<1x2048xf32, #tpu.memory_space<vmem>>, %arg1: memref<1x2048xf32, #tpu.memory_space<vmem>>) attributes {dimension_semantics = [], scalar_prefetch = 0 : i64, scratch_operands = 0 : i64, tpu.core_type = #tpu.core_type<tc>} {
    %c0 = arith.constant 0 : index
    %c0_0 = arith.constant 0 : index
    %0 = vector.load %arg0[%c0, %c0_0] : memref<1x2048xf32, #tpu.memory_space<vmem>>, vector<1x2048xf32>
    %c0_1 = arith.constant 0 : index
    %c0_2 = arith.constant 0 : index
    %1 = vector.load %arg1[%c0_1, %c0_2] : memref<1x2048xf32, #tpu.memory_space<vmem>>, vector<1x2048xf32>
    tpu.vector_store %arg1[%c0_1, %c0_2], %0 {strides = array<i32>} : memref<1x2048xf32, #tpu.memory_space<vmem>>, vector<1x2048xf32>,
    return
  }
}

</mosaic_0001>

<llo_original>
// kernel: tpu_custom_call.1
$region0: #{tpu_custom_call.1}
  #allocation0 [shape = 'u32[]', space=smem, size = 0x4, offset = 0x4, fixed_abs, tag = 'smem constant byte address 0x4 - core index']
  #allocation1 [shape = 'u32[144,128]{1,0:T(1,128)}', space=vmem, size = 0x12000, scoped, tag = 'internal scratch']
  %s0 = inlined_call_operand.hbm [shape: f32[1,2048], index: 0, kind: input, shape index: {}, may-alias: {0,1}]
  %s1 = inlined_call_operand.hbm [shape: f32[1,2048], index: 1, kind: output, shape index: {}, may-alias: {0,1}]
  %s2 = sld [smem:[#allocation0]]
  $region18: #{tpu_custom_call.1} parent=0
    _
  %s4 = ssub.s32 1, %s2
  %s5 = scalar_select 0, %s4, %s2
  $region1: #{tpu_custom_call.1} parent=0
    #allocation2 [shape = 'u8[8192]{0}', space=vmem, size = 0x2000, scoped, tag = 'input window, operand 0, single buffered']
    #allocation3 [shape = 's32[1]{0}', space=sflag, size = 0x4, scoped, tag = 'scoped memory for tpu_custom_call.1']
    #allocation4 [shape = 's32[1]{0}', space=sflag, size = 0x4, scoped, tag = 'scoped memory for tpu_custom_call.1']
    #allocation5 [shape = 'u8[8192]{0}', space=vmem, size = 0x2000, scoped, tag = 'output window, operand 0, single buffered']
    %6 = vsyncpa [#allocation3], 0
    %7 = vsyncpa [#allocation4], 0
    // Predicated region
    $region2: #{tpu_custom_call.1} parent=1 // pred_check
      _
    $region3: #{tpu_custom_call.1} parent=1 // pred_check_branch
      %9 = sbr.rel (0) target = $region5
    $region4: #{tpu_custom_call.1} parent=1 // pred_region
      %s11 = ssub.s32 256, 256
      %12 = vsyncadd [#allocation3], %s11
      %s14 = sshll.u32 [#allocation2], 4
      %s15 = int_to_ptr.vmem [resolvable:$true] %s14
      %17 = dma.hbm_to_vmem [thread:$0]  %s0, 256, %s15, [#allocation3]
    $region5: #{tpu_custom_call.1} parent=1 // pred_fallthru
      _
    // Predicated region
    $region6: #{tpu_custom_call.1} parent=1 // pred_check
      _
    $region7: #{tpu_custom_call.1} parent=1 // pred_check_branch
      %19 = sbr.rel (0) target = $region9
    $region8: #{tpu_custom_call.1} parent=1 // pred_region
      %20 = dma.done [#allocation3], 256
    $region9: #{tpu_custom_call.1} parent=1 // pred_fallthru
      _
    %v21 = vld [vmem:[#allocation2] sm:$0xff]
    %v22 = vld [vmem:[#allocation2 + $0x8] sm:$0xff]
    %23 = vst [vmem:[#allocation5] sm:$0xff] %v21
    %24 = vst [vmem:[#allocation5 + $0x8] sm:$0xff] %v22
    // Predicated region
    $region10: #{tpu_custom_call.1} parent=1 // pred_check
      _
    $region11: #{tpu_custom_call.1} parent=1 // pred_check_branch
      %26 = sbr.rel (0) target = $region13
    $region12: #{tpu_custom_call.1} parent=1 // pred_region
      %s28 = ssub.s32 256, 256
      %29 = vsyncadd [#allocation4], %s28
      %s31 = sshll.u32 [#allocation5], 4
      %s32 = int_to_ptr.vmem [resolvable:$true] %s31
      %34 = dma.vmem_to_hbm [thread:$0]  %s32, 256, %s1, [#allocation4]
    $region13: #{tpu_custom_call.1} parent=1 // pred_fallthru
      _
    // Predicated region
    $region14: #{tpu_custom_call.1} parent=1 // pred_check
      _
    $region15: #{tpu_custom_call.1} parent=1 // pred_check_branch
      %36 = sbr.rel (0) target = $region17
    $region16: #{tpu_custom_call.1} parent=1 // pred_region
      %37 = dma.done [#allocation4], 256
    $region17: #{tpu_custom_call.1} parent=1 // pred_fallthru
      _
    %38 = vsyncpa [#allocation3], 1
    %39 = vsyncpa [#allocation4], 1

</llo_original>
